<compile_context>
chip_gen: v5e
topology: v5e:2x2
jax: 0.10.0
libtpu: 0.0.40
codegen_flags: <defaults>
</compile_context>

<pallas_src>
import jax
import jax.numpy as jnp
from jax.experimental import pallas as pl
from jax.experimental.pallas import tpu as pltpu


# ---------------------------------------------------------------------------
# Kernels
# ---------------------------------------------------------------------------

def _graph_classifier_kernel_flat(xf_ref, wblk_ref, ba_ref, expand_ref,
                                  pool_ref, wc_ref, bc_ref, y_ref, rep_ref):
    """Lane-dense path for small embeddings (D < 128).

    x arrives as a flat (tb, S*D) block so the elementwise work is lane-dense.
    Segmented (per-position) reductions are MXU matmuls:
        score  = tanh(x_flat) @ wblk + ba            # (tb, S)
        e_flat = e @ expand                           # (tb, S*D)
        rep    = (e_flat * x_flat) @ pool * 1/denom   # (tb, D)
    """
    xf = xf_ref[...]                                            # (tb, S*D)
    act = jnp.tanh(xf)                                          # EUP, lane-dense
    score = jnp.dot(act, wblk_ref[...],
                    preferred_element_type=jnp.float32) + ba_ref[0]     # (tb, S)
    m = jnp.max(score, axis=-1, keepdims=True)                  # (tb, 1)
    e = jnp.exp(score - m)                                      # (tb, S)
    inv = pl.reciprocal(jnp.sum(e, axis=-1, keepdims=True), approx=False)
    e_flat = jnp.dot(e, expand_ref[...],
                     preferred_element_type=jnp.float32)        # (tb, S*D)
    rep = jnp.dot(e_flat * xf, pool_ref[...],
                  preferred_element_type=jnp.float32) * inv     # (tb, D)
    y = jnp.dot(rep, wc_ref[...],
                preferred_element_type=jnp.float32) + bc_ref[...]        # (tb, C)
    y_ref[...] = y.astype(y_ref.dtype)
    rep_ref[...] = rep.astype(rep_ref.dtype)


def _graph_classifier_kernel_3d(x_ref, wa_ref, ba_ref, wc_ref, bc_ref,
                                y_ref, rep_ref):
    """Wide-embedding path (D >= 128): D already fills the 128 lanes.

    The whole softmax pipeline stays in (tb, S, 1) layout (D on lanes
    throughout); the seq-axis max/sum are cheap sublane reduces and there is
    no (tb,S) <-> (tb,S,1) relayout.
    """
    x = x_ref[...]                                              # (tb, S, D)
    act = jnp.tanh(x)
    wa = wa_ref[...]                                            # (1, D)
    score = jnp.sum(act * wa[None, :, :], axis=-1,
                    keepdims=True) + ba_ref[0]                  # (tb, S, 1)
    m = jnp.max(score, axis=1, keepdims=True)                   # (tb, 1, 1)
    e = jnp.exp(score - m)                                      # (tb, S, 1)
    inv = pl.reciprocal(jnp.sum(e, axis=1, keepdims=True), approx=False)
    # NOTE: e * x is a VMEM-local (tb,S,D) temp; acceptable (no HBM traffic).
    rep = jnp.sum(e * x, axis=1) * inv[:, 0]                    # (tb, D)
    y = jnp.dot(rep, wc_ref[...],
                preferred_element_type=jnp.float32) + bc_ref[...]
    y_ref[...] = y.astype(y_ref.dtype)
    rep_ref[...] = rep.astype(rep_ref.dtype)


# ---------------------------------------------------------------------------
# Host-side sizing helpers
# ---------------------------------------------------------------------------

def _tpu_target():
    """(vmem_budget_bytes, tensorcores_per_device), generation-aware.

    Budgets stay below every generation's *default* scoped-VMEM limit
    (16 MiB v5e, 32 MiB v6e/v7x) so no vmem_limit_bytes override is needed,
    with extra headroom on v7x whose physical VMEM is only 64 MiB.
    """
    vmem_budget = 12 * 1024 * 1024            # safe default (fits v5e's 16 MiB)
    num_cores = 1
    try:
        kind = jax.devices()[0].device_kind.lower()
    except Exception:
        return vmem_budget, num_cores
    if "v6" in kind:                          # v6e: 128 MiB VMEM, 32 MiB scoped default
        vmem_budget = 24 * 1024 * 1024
    elif "7" in kind:                         # v7x: 64 MiB VMEM, 2 TensorCores
        vmem_budget = 20 * 1024 * 1024
        num_cores = 2
    elif "v4" in kind or "v5p" in kind:       # megacore generations
        vmem_budget = 24 * 1024 * 1024
        num_cores = 2
    return vmem_budget, num_cores


def _pick_block_b(B, S, D, C, vmem_budget_bytes, num_cores):
    """Rows per grid step.

    Sized purely from the VMEM budget (double-buffered x/y/rep blocks); the
    ">= num_cores grid steps" split only applies with >1 TensorCore and a
    batch big enough that each piece stays >= 8 rows.  Result is either == B
    or a multiple of 8 so stores stay unmasked.
    """
    bytes_per_row = 4 * (S * D + D + C) * 2          # f32, double-buffered
    tb = max(1, vmem_budget_bytes // max(1, bytes_per_row))
    if num_cores > 1 and B >= 8 * num_cores:
        tb = min(tb, pl.cdiv(B, num_cores))
    if tb >= B:
        return int(B)
    if tb >= 8:
        tb = (tb // 8) * 8
    return int(tb)


# ---------------------------------------------------------------------------
# Wrapper
# ---------------------------------------------------------------------------

def graph_classifier_forward(x, w_attn, b_attn, w_cls, b_cls, *, block_b=None):
    """x: [B, S, D] f32.  w_attn: [D] (attn_linear.weight^T), b_attn: [1],
    w_cls: [D, C] (classifier.weight^T), b_cls: [C].
    Returns (y [B, C], rep [B, D])."""
    B, S, D = x.shape
    C = w_cls.shape[-1]

    x = x.astype(jnp.float32)
    wa = jnp.asarray(w_attn, jnp.float32).reshape(1, D)
    ba = jnp.asarray(b_attn, jnp.float32).reshape(1)
    wc = jnp.asarray(w_cls, jnp.float32).reshape(D, C)
    bc = jnp.asarray(b_cls, jnp.float32).reshape(1, C)

    vmem_budget, num_cores = _tpu_target()
    if block_b is None:
        tb = _pick_block_b(B, S, D, C, vmem_budget, num_cores)
    else:
        tb = max(1, min(int(block_b), B))
    # No host-side padding: Pallas masks the ragged tail block.
    n_blocks = pl.cdiv(B, tb)

    # Lane-dense flat path pays off when D under-fills the 128 lanes and the
    # host-built block-diagonal helper matrices (S*D x {S,S,D}) stay small.
    use_flat = (D < 128) and (S * D * (2 * S + D) * 4 <= 4 * 1024 * 1024)

    if use_flat:
        mxu_flops = 2 * B * S * D * (2 * S + D) + 2 * B * D * C
    else:
        mxu_flops = 2 * B * D * C
    cost = pl.CostEstimate(
        flops=int(mxu_flops + 6 * B * S * D + 8 * B * S),
        transcendentals=int(B * S * D + B * S + B),
        bytes_accessed=int(4 * (B * S * D + B * D + B * C + D + 1 + D * C + C)),
    )

    out_shape = (jax.ShapeDtypeStruct((B, C), jnp.float32),
                 jax.ShapeDtypeStruct((B, D), jnp.float32))
    out_specs = [pl.BlockSpec((tb, C), lambda b: (b, 0)),
                 pl.BlockSpec((tb, D), lambda b: (b, 0))]

    if use_flat:
        # Metadata-only reshape (collapses contiguous minor dims) -> no extra
        # HBM pass, unlike the old jnp.pad.
        x_in = x.reshape(B, S * D)
        eye_s = jnp.eye(S, dtype=jnp.float32)
        # wblk[s*D+d, s'] = (s==s') * wa[d]  : folds attn weight into the score dot
        wblk = jnp.kron(eye_s, wa.reshape(D, 1))                       # (S*D, S)
        # expand[s, s'*D+d] = (s==s')        : broadcasts e back onto flat layout
        expand = jnp.kron(eye_s, jnp.ones((1, D), jnp.float32))        # (S, S*D)
        # pool[s*D+d, d'] = (d==d')          : sums over s for the pooled rep
        pool = jnp.tile(jnp.eye(D, dtype=jnp.float32), (S, 1))         # (S*D, D)
        kernel = _graph_classifier_kernel_flat
        in_specs = [
            pl.BlockSpec((tb, S * D), lambda b: (b, 0)),               # x rows (lane-dense)
            pl.BlockSpec((S * D, S), lambda b: (0, 0)),                # wa block-diagonal
            pl.BlockSpec(memory_space=pltpu.MemorySpace.SMEM),         # attn bias scalar
            pl.BlockSpec((S, S * D), lambda b: (0, 0)),                # e expansion
            pl.BlockSpec((S * D, D), lambda b: (0, 0)),                # pooling matrix
            pl.BlockSpec((D, C), lambda b: (0, 0)),                    # classifier weight
            pl.BlockSpec((1, C), lambda b: (0, 0)),                    # classifier bias
        ]
        args = (x_in, wblk, ba, expand, pool, wc, bc)
    else:
        kernel = _graph_classifier_kernel_3d
        in_specs = [
            pl.BlockSpec((tb, S, D), lambda b: (b, 0, 0)),             # x rows
            pl.BlockSpec((1, D), lambda b: (0, 0)),                    # attn weight
            pl.BlockSpec(memory_space=pltpu.MemorySpace.SMEM),         # attn bias scalar
            pl.BlockSpec((D, C), lambda b: (0, 0)),                    # classifier weight
            pl.BlockSpec((1, C), lambda b: (0, 0)),                    # classifier bias
        ]
        args = (x, wa, ba, wc, bc)

    y, rep = pl.pallas_call(
        kernel,
        out_shape=out_shape,
        grid_spec=pltpu.PrefetchScalarGridSpec(
            num_scalar_prefetch=0,
            grid=(n_blocks,),
            in_specs=in_specs,
            out_specs=out_specs,
        ),
        compiler_params=pltpu.CompilerParams(
            dimension_semantics=("parallel",)),
        cost_estimate=cost,
    )(*args)
    return y, rep


# ---------------------------------------------------------------------------
# Reference + tests
# ---------------------------------------------------------------------------

def _reference_forward(x, w_attn, b_attn, w_cls, b_cls):
    act = jnp.tanh(x)
    score = act @ jnp.asarray(w_attn).reshape(-1, 1) + b_attn      # [B, S, 1]
    weights = jax.nn.softmax(score, axis=1)
    rep = jnp.sum(weights * x, axis=1)                             # [B, D]
    y = rep @ w_cls + b_cls                                        # [B, C]
    return y, rep


if __name__ == "__main__":
    key = jax.random.PRNGKey(0)

    def make_params(k, D, C):
        kwa, kba, kwc, kbc = jax.random.split(k, 4)
        w_attn = jax.random.normal(kwa, (D,), jnp.float32) * 0.1   # Linear(D,1).weight^T
        b_attn = jax.random.normal(kba, (1,), jnp.float32) * 0.1   # Linear(D,1).bias
        w_cls = jax.random.normal(kwc, (D, C), jnp.float32) * 0.1  # Linear(D,C).weight^T
        b_cls = jax.random.normal(kbc, (C,), jnp.float32) * 0.1    # Linear(D,C).bias
        return w_attn, b_attn, w_cls, b_cls

    def check(name, x, params, block_b=None):
        y, rep = graph_classifier_forward(x, *params, block_b=block_b)
        jax.block_until_ready((y, rep))
        y_ref, rep_ref = _reference_forward(x, *params)
        assert jnp.allclose(y, y_ref, atol=2e-4, rtol=2e-4), name
        assert jnp.allclose(rep, rep_ref, atol=2e-4, rtol=2e-4), name

    S, D, C = 8, 32, 4
    params = make_params(jax.random.fold_in(key, 0), D, C)

    # 1. nominal tiny batch: lane-dense flat path, single exact block
    x = jax.random.normal(jax.random.fold_in(key, 1), (2, S, D), jnp.float32)
    check("tiny", x, params)

    # 2. multi-step grid: exact 8-row blocks (unmasked stores), parallel axis
    x = jax.random.normal(jax.random.fold_in(key, 2), (32, S, D), jnp.float32)
    check("multi-block", x, params, block_b=8)

    # 3. ragged batch, no host-side padding (partial tail block masked by Pallas)
    x = jax.random.normal(jax.random.fold_in(key, 3), (10, S, D), jnp.float32)
    check("ragged", x, params, block_b=8)

    # 4. wide embedding (D >= 128): exercises the (tb, S, 1)-keepdims 3-D path
    D2 = 128
    params2 = make_params(jax.random.fold_in(key, 4), D2, C)
    x = jax.random.normal(jax.random.fold_in(key, 5), (4, S, D2), jnp.float32)
    check("wide-embed", x, params2)

    print("KERNEL_OK")
</pallas_src>

<mosaic_0001>
module attributes {stable_mosaic.version = 11 : i64} {
  func.func @_graph_classifier_kernel_flat(%arg0: i32, %arg1: memref<2x256xf32, #tpu.memory_space<vmem>>, %arg2: memref<256x8xf32, #tpu.memory_space<vmem>>, %arg3: memref<1xf32, #tpu.memory_space<smem>>, %arg4: memref<8x256xf32, #tpu.memory_space<vmem>>, %arg5: memref<256x32xf32, #tpu.memory_space<vmem>>, %arg6: memref<32x4xf32, #tpu.memory_space<vmem>>, %arg7: memref<1x4xf32, #tpu.memory_space<vmem>>, %arg8: memref<2x4xf32, #tpu.memory_space<vmem>>, %arg9: memref<2x32xf32, #tpu.memory_space<vmem>>) attributes {dimension_semantics = [#tpu.dimension_semantics<parallel>], iteration_bounds = array<i64: 1>, scalar_prefetch = 0 : i64, scratch_operands = 0 : i64, tpu.core_type = #tpu.core_type<tc>, window_params = [{transform_indices = @transform_0, window_bounds = array<i64: 2, 256>}, {pipeline_mode = #tpu.pipeline_mode<synchronous>, transform_indices = @transform_1, window_bounds = array<i64: 256, 8>}, {transform_indices = @transform_2, window_bounds = array<i64: 1>}, {pipeline_mode = #tpu.pipeline_mode<synchronous>, transform_indices = @transform_3, window_bounds = array<i64: 8, 256>}, {pipeline_mode = #tpu.pipeline_mode<synchronous>, transform_indices = @transform_4, window_bounds = array<i64: 256, 32>}, {pipeline_mode = #tpu.pipeline_mode<synchronous>, transform_indices = @transform_5, window_bounds = array<i64: 32, 4>}, {pipeline_mode = #tpu.pipeline_mode<synchronous>, transform_indices = @transform_6, window_bounds = array<i64: 1, 4>}, {transform_indices = @transform_7, window_bounds = array<i64: 2, 4>}, {transform_indices = @transform_8, window_bounds = array<i64: 2, 32>}]} {
    %c0 = arith.constant 0 : index
    %c0_0 = arith.constant 0 : index
    %0 = vector.load %arg1[%c0, %c0_0] : memref<2x256xf32, #tpu.memory_space<vmem>>, vector<2x256xf32>
    %1 = math.tanh %0 : vector<2x256xf32>
    %c0_1 = arith.constant 0 : index
    %c0_2 = arith.constant 0 : index
    %2 = vector.load %arg2[%c0_1, %c0_2] : memref<256x8xf32, #tpu.memory_space<vmem>>, vector<256x8xf32>
    %cst = arith.constant dense<0.000000e+00> : vector<2x8xf32>
    %3 = tpu.matmul %1, %2, %cst {dimension_numbers = #tpu.dot_dimension_numbers<[1], [0], [0], [1], [0, 0, 1, 1], [], []>} : vector<2x256xf32>, vector<256x8xf32>, vector<2x8xf32> -> vector<2x8xf32>
    %c0_3 = arith.constant 0 : index
    %4 = memref.load %arg3[%c0_3] : memref<1xf32, #tpu.memory_space<smem>>
    %5 = vector.broadcast %4 : f32 to vector<2x8xf32>
    %6 = arith.addf %3, %5 : vector<2x8xf32>
    %cst_4 = arith.constant dense<0xFF800000> : vector<2xf32>
    %7 = vector.multi_reduction <maximumf>, %6, %cst_4 [1] : vector<2x8xf32> to vector<2xf32>
    %8 = vector.shape_cast %7 : vector<2xf32> to vector<2x1xf32>
    %9 = vector.broadcast %8 : vector<2x1xf32> to vector<2x8xf32>
    %10 = arith.subf %6, %9 : vector<2x8xf32>
    %11 = math.exp %10 : vector<2x8xf32>
    %cst_5 = arith.constant dense<0.000000e+00> : vector<2xf32>
    %12 = vector.multi_reduction <add>, %11, %cst_5 [1] : vector<2x8xf32> to vector<2xf32>
    %13 = vector.shape_cast %12 : vector<2xf32> to vector<2x1xf32>
    %14 = tpu.reciprocal %13 : vector<2x1xf32> -> vector<2x1xf32>
    %c0_6 = arith.constant 0 : index
    %c0_7 = arith.constant 0 : index
    %15 = vector.load %arg4[%c0_6, %c0_7] : memref<8x256xf32, #tpu.memory_space<vmem>>, vector<8x256xf32>
    %cst_8 = arith.constant dense<0.000000e+00> : vector<2x256xf32>
    %16 = tpu.matmul %11, %15, %cst_8 {dimension_numbers = #tpu.dot_dimension_numbers<[1], [0], [0], [1], [0, 0, 1, 1], [], []>} : vector<2x8xf32>, vector<8x256xf32>, vector<2x256xf32> -> vector<2x256xf32>
    %17 = arith.mulf %16, %0 : vector<2x256xf32>
    %c0_9 = arith.constant 0 : index
    %c0_10 = arith.constant 0 : index
    %18 = vector.load %arg5[%c0_9, %c0_10] : memref<256x32xf32, #tpu.memory_space<vmem>>, vector<256x32xf32>
    %cst_11 = arith.constant dense<0.000000e+00> : vector<2x32xf32>
    %19 = tpu.matmul %17, %18, %cst_11 {dimension_numbers = #tpu.dot_dimension_numbers<[1], [0], [0], [1], [0, 0, 1, 1], [], []>} : vector<2x256xf32>, vector<256x32xf32>, vector<2x32xf32> -> vector<2x32xf32>
    %20 = vector.broadcast %14 : vector<2x1xf32> to vector<2x32xf32>
    %21 = arith.mulf %19, %20 : vector<2x32xf32>
    %c0_12 = arith.constant 0 : index
    %c0_13 = arith.constant 0 : index
    %22 = vector.load %arg6[%c0_12, %c0_13] : memref<32x4xf32, #tpu.memory_space<vmem>>, vector<32x4xf32>
    %cst_14 = arith.constant dense<0.000000e+00> : vector<2x4xf32>
    %23 = tpu.matmul %21, %22, %cst_14 {dimension_numbers = #tpu.dot_dimension_numbers<[1], [0], [0], [1], [0, 0, 1, 1], [], []>} : vector<2x32xf32>, vector<32x4xf32>, vector<2x4xf32> -> vector<2x4xf32>
    %c0_15 = arith.constant 0 : index
    %c0_16 = arith.constant 0 : index
    %24 = vector.load %arg7[%c0_15, %c0_16] : memref<1x4xf32, #tpu.memory_space<vmem>>, vector<1x4xf32>
    %25 = vector.broadcast %24 : vector<1x4xf32> to vector<2x4xf32>
    %26 = arith.addf %23, %25 : vector<2x4xf32>
    %c0_17 = arith.constant 0 : index
    %c0_18 = arith.constant 0 : index
    %27 = vector.load %arg8[%c0_17, %c0_18] : memref<2x4xf32, #tpu.memory_space<vmem>>, vector<2x4xf32>
    tpu.vector_store %arg8[%c0_17, %c0_18], %26 {strides = array<i32>} : memref<2x4xf32, #tpu.memory_space<vmem>>, vector<2x4xf32>,
    %c0_19 = arith.constant 0 : index
    %c0_20 = arith.constant 0 : index
    %28 = vector.load %arg9[%c0_19, %c0_20] : memref<2x32xf32, #tpu.memory_space<vmem>>, vector<2x32xf32>
    tpu.vector_store %arg9[%c0_19, %c0_20], %21 {strides = array<i32>} : memref<2x32xf32, #tpu.memory_space<vmem>>, vector<2x32xf32>,
    return
  }
  func.func @transform_0(%arg0: i32) -> (i32, i32) {
    %c0_i32 = arith.constant 0 : i32
    %c0_i32_0 = arith.constant 0 : i32
    return %arg0, %c0_i32 : i32, i32
  }
  func.func @transform_1(%arg0: i32) -> (i32, i32) {
    %c0_i32 = arith.constant 0 : i32
    %c0_i32_0 = arith.constant 0 : i32
    %c0_i32_1 = arith.constant 0 : i32
    return %c0_i32, %c0_i32_0 : i32, i32
  }
  func.func @transform_2(%arg0: i32) -> i32 {
    %c0_i32 = arith.constant 0 : i32
    %c0_i32_0 = arith.constant 0 : i32
    return %c0_i32 : i32
  }
  func.func @transform_3(%arg0: i32) -> (i32, i32) {
    %c0_i32 = arith.constant 0 : i32
    %c0_i32_0 = arith.constant 0 : i32
    %c0_i32_1 = arith.constant 0 : i32
    return %c0_i32, %c0_i32_0 : i32, i32
  }
  func.func @transform_4(%arg0: i32) -> (i32, i32) {
    %c0_i32 = arith.constant 0 : i32
    %c0_i32_0 = arith.constant 0 : i32
    %c0_i32_1 = arith.constant 0 : i32
    return %c0_i32, %c0_i32_0 : i32, i32
  }
  func.func @transform_5(%arg0: i32) -> (i32, i32) {
    %c0_i32 = arith.constant 0 : i32
    %c0_i32_0 = arith.constant 0 : i32
    %c0_i32_1 = arith.constant 0 : i32
    return %c0_i32, %c0_i32_0 : i32, i32
  }
  func.func @transform_6(%arg0: i32) -> (i32, i32) {
    %c0_i32 = arith.constant 0 : i32
    %c0_i32_0 = arith.constant 0 : i32
    %c0_i32_1 = arith.constant 0 : i32
    return %c0_i32, %c0_i32_0 : i32, i32
  }
  func.func @transform_7(%arg0: i32) -> (i32, i32) {
    %c0_i32 = arith.constant 0 : i32
    %c0_i32_0 = arith.constant 0 : i32
    return %arg0, %c0_i32 : i32, i32
  }
  func.func @transform_8(%arg0: i32) -> (i32, i32) {
    %c0_i32 = arith.constant 0 : i32
    %c0_i32_0 = arith.constant 0 : i32
    return %arg0, %c0_i32 : i32, i32
  }
}

</mosaic_0001>

<llo_original>
// kernel: tpu_custom_call.1
$region0: #{tpu_custom_call.1}
  #allocation0 [shape = 'u32[]', space=smem, size = 0x4, offset = 0x4, fixed_abs, tag = 'smem constant byte address 0x4 - core index']
  #allocation1 [shape = 'u32[72,128]{1,0:T(1,128)}', space=vmem, size = 0x9000, scoped, tag = 'internal scratch']
  #allocation2 [shape = 'f32[1]{0:T(128)S(6)}', space=smem, size = 0x200, scoped, tag = 'scoped memory for tpu_custom_call.1']
  %s0 = inlined_call_operand.vmem [shape: f32[2,256], index: 0, kind: input, shape index: {}]
  %s1 = inlined_call_operand.vmem [shape: f32[256,8], index: 1, kind: input, shape index: {}]
  %s2 = inlined_call_operand.<no memory space> [shape: f32[1], index: 2, kind: input, shape index: {}]
  %s3 = inlined_call_operand.vmem [shape: f32[8,256], index: 3, kind: input, shape index: {}]
  %s4 = inlined_call_operand.vmem [shape: f32[256,32], index: 4, kind: input, shape index: {}]
  %s5 = inlined_call_operand.vmem [shape: f32[32,4], index: 5, kind: input, shape index: {}]
  %s6 = inlined_call_operand.vmem [shape: f32[1,4], index: 6, kind: input, shape index: {}]
  %s7 = inlined_call_operand.hbm [shape: f32[2,4], index: 7, kind: output, shape index: {0}]
  %s8 = inlined_call_operand.hbm [shape: f32[2,32], index: 8, kind: output, shape index: {1}]
  %9 = xla_tuple %s7, %s8
  %s10 = sld [smem:[#allocation0]]
  $region46: #{tpu_custom_call.1} parent=0
    _
  %s12 = ssub.s32 1, %s10
  %s13 = scalar_select 0, %s12, %s10
  %14 = sst [smem:[#allocation2]] %s2
  $region1: #{tpu_custom_call.1} parent=0
    #allocation3 [shape = 'u8[1024]{0}', space=vmem, size = 0x400, scoped, tag = 'output window, operand 0, single buffered']
    #allocation4 [shape = 's32[1]{0}', space=sflag, size = 0x4, scoped, tag = 'scoped memory for tpu_custom_call.1']
    #allocation5 [shape = 'u8[1024]{0}', space=vmem, size = 0x400, scoped, tag = 'output window, operand 1, single buffered']
    #allocation6 [shape = 's32[1]{0}', space=sflag, size = 0x4, scoped, tag = 'scoped memory for tpu_custom_call.1']
    %15 = vsyncpa [#allocation4], 0
    %16 = vsyncpa [#allocation6], 0
    // Predicated region
    $region2: #{tpu_custom_call.1} parent=1 // pred_check
      _
    $region3: #{tpu_custom_call.1} parent=1 // pred_check_branch
      %18 = sbr.rel (0) target = $region5
    $region4: #{tpu_custom_call.1} parent=1 // pred_region
      _
    $region5: #{tpu_custom_call.1} parent=1 // pred_fallthru
      _
    // Predicated region
    $region6: #{tpu_custom_call.1} parent=1 // pred_check
      _
    $region7: #{tpu_custom_call.1} parent=1 // pred_check_branch
      %20 = sbr.rel (0) target = $region9
    $region8: #{tpu_custom_call.1} parent=1 // pred_region
      _
    $region9: #{tpu_custom_call.1} parent=1 // pred_fallthru
      _
    // Predicated region
    $region10: #{tpu_custom_call.1} parent=1 // pred_check
      _
    $region11: #{tpu_custom_call.1} parent=1 // pred_check_branch
      %22 = sbr.rel (0) target = $region13
    $region12: #{tpu_custom_call.1} parent=1 // pred_region
      _
    $region13: #{tpu_custom_call.1} parent=1 // pred_fallthru
      _
    // Predicated region
    $region14: #{tpu_custom_call.1} parent=1 // pred_check
      _
    $region15: #{tpu_custom_call.1} parent=1 // pred_check_branch
      %24 = sbr.rel (0) target = $region17
    $region16: #{tpu_custom_call.1} parent=1 // pred_region
      _
    $region17: #{tpu_custom_call.1} parent=1 // pred_fallthru
      _
    // Predicated region
    $region18: #{tpu_custom_call.1} parent=1 // pred_check
      _
    $region19: #{tpu_custom_call.1} parent=1 // pred_check_branch
      %26 = sbr.rel (0) target = $region21
    $region20: #{tpu_custom_call.1} parent=1 // pred_region
      _
    $region21: #{tpu_custom_call.1} parent=1 // pred_fallthru
      _
    // Predicated region
    $region22: #{tpu_custom_call.1} parent=1 // pred_check
      _
    $region23: #{tpu_custom_call.1} parent=1 // pred_check_branch
      %28 = sbr.rel (0) target = $region25
    $region24: #{tpu_custom_call.1} parent=1 // pred_region
      _
    $region25: #{tpu_custom_call.1} parent=1 // pred_fallthru
      _
    // Predicated region
    $region26: #{tpu_custom_call.1} parent=1 // pred_check
      _
    $region27: #{tpu_custom_call.1} parent=1 // pred_check_branch
      %30 = sbr.rel (0) target = $region29
    $region28: #{tpu_custom_call.1} parent=1 // pred_region
      _
    $region29: #{tpu_custom_call.1} parent=1 // pred_fallthru
      _
    %v31 = vld [vmem:[%s0] sm:$0xf]
    %v32 = vtanh.pop %v31
    %v33 = vld [vmem:[%s1] sm:$0xff]
    %v34 = vld [vmem:[%s1 + $0x8] sm:$0xff]
    %v35 = vld [vmem:[%s1 + $0x10] sm:$0xff]
    %v36 = vld [vmem:[%s1 + $0x18] sm:$0xff]
    %v37 = vld [vmem:[%s1 + $0x20] sm:$0xff]
    %v38 = vld [vmem:[%s1 + $0x28] sm:$0xff]
    %v39 = vld [vmem:[%s1 + $0x30] sm:$0xff]
    %v40 = vld [vmem:[%s1 + $0x38] sm:$0xff]
    %v41 = vld [vmem:[%s1 + $0x40] sm:$0xff]
    %v42 = vld [vmem:[%s1 + $0x48] sm:$0xff]
    %v43 = vld [vmem:[%s1 + $0x50] sm:$0xff]
    %v44 = vld [vmem:[%s1 + $0x58] sm:$0xff]
    %v45 = vld [vmem:[%s1 + $0x60] sm:$0xff]
    %v46 = vld [vmem:[%s1 + $0x68] sm:$0xff]
    %v47 = vld [vmem:[%s1 + $0x70] sm:$0xff]
    %v48 = vld [vmem:[%s1 + $0x78] sm:$0xff]
    %v49 = vld [vmem:[%s1 + $0x80] sm:$0xff]
    %v50 = vld [vmem:[%s1 + $0x88] sm:$0xff]
    %v51 = vld [vmem:[%s1 + $0x90] sm:$0xff]
    %v52 = vld [vmem:[%s1 + $0x98] sm:$0xff]
    %v53 = vld [vmem:[%s1 + $0xa0] sm:$0xff]
    %v54 = vld [vmem:[%s1 + $0xa8] sm:$0xff]
    %v55 = vld [vmem:[%s1 + $0xb0] sm:$0xff]
    %v56 = vld [vmem:[%s1 + $0xb8] sm:$0xff]
    %v57 = vld [vmem:[%s1 + $0xc0] sm:$0xff]
    %v58 = vld [vmem:[%s1 + $0xc8] sm:$0xff]
    %v59 = vld [vmem:[%s1 + $0xd0] sm:$0xff]
    %v60 = vld [vmem:[%s1 + $0xd8] sm:$0xff]
    %v61 = vld [vmem:[%s1 + $0xe0] sm:$0xff]
    %v62 = vld [vmem:[%s1 + $0xe8] sm:$0xff]
    %v63 = vld [vmem:[%s1 + $0xf0] sm:$0xff]
    %v64 = vld [vmem:[%s1 + $0xf8] sm:$0xff]
    %s65 = sld [smem:[#allocation2]]
    %v66 = vstv %s65
    %68 = vst [vmem:[#allocation1] ss:$4 sm:$0xff] %v32
    %v69 = vld.sshfl [vmem:[#allocation1] sm:$0xff pattern:$0x73625140]
    %v70 = vld.sshfl [vmem:[#allocation1 + $0x8] sm:$0xff pattern:$0x73625140]
    %73 = vmatpush.msra.mxu0 %v48
    %74 = vmatpush.msra.mxu0 %v47
    %75 = vmatpush.msra.mxu0 %v46
    %76 = vmatpush.msra.mxu0 %v45
    %77 = vmatpush.msra.mxu0 %v44
    %78 = vmatpush.msra.mxu0 %v43
    %79 = vmatpush.msra.mxu0 %v42
    %80 = vmatpush.msra.mxu0 %v41
    %81 = vmatpush.msra.mxu0 %v40
    %82 = vmatpush.msra.mxu0 %v39
    %83 = vmatpush.msra.mxu0 %v38
    %84 = vmatpush.msra.mxu0 %v37
    %85 = vmatpush.msra.mxu0 %v36
    %86 = vmatpush.msra.mxu0 %v35
    %87 = vmatpush.msra.mxu0 %v34
    %88 = vmatpush.msra.mxu0 %v33
    %89 = vmatmul.f32.gmra.mxu0 %v69
    %v90 = vpop.f32.mrf.mxu0
    %v91 = vadd.f32 %v66, %v90
    %92 = vdwg.mxu0
    %93 = vmatpush.msra.mxu0 %v64
    %94 = vmatpush.msra.mxu0 %v63
    %95 = vmatpush.msra.mxu0 %v62
    %96 = vmatpush.msra.mxu0 %v61
    %97 = vmatpush.msra.mxu0 %v60
    %98 = vmatpush.msra.mxu0 %v59
    %99 = vmatpush.msra.mxu0 %v58
    %100 = vmatpush.msra.mxu0 %v57
    %101 = vmatpush.msra.mxu0 %v56
    %102 = vmatpush.msra.mxu0 %v55
    %103 = vmatpush.msra.mxu0 %v54
    %104 = vmatpush.msra.mxu0 %v53
    %105 = vmatpush.msra.mxu0 %v52
    %106 = vmatpush.msra.mxu0 %v51
    %107 = vmatpush.msra.mxu0 %v50
    %108 = vmatpush.msra.mxu0 %v49
    %109 = vmatmul.f32.gmra.mxu0 %v70
    %v110 = vpop.f32.mrf.mxu0
    %v111 = vadd.f32 %v91, %v110
    %112 = vdwg.mxu0
    %vm113 = vcmask 58368
    %v114 = vsel %vm113, %v111, -inf
    %115 = vmax.xlane.f32.xlu0 %v114
    %v116 = vpop.xlane.xlu0 %115
    %v117 = vsub.f32 %v111, %v116
    %v118 = vmul.f32 %v117, 1.442695
    %v119 = vpow.pop %v118
    %v120 = vsel %vm113, %v119, 0.0
    %121 = vadd.xlane.f32.xlu0 %v120
    %v122 = vpop.xlane.xlu0 %121
    %v123 = vrcp.pop %v122
    %v124 = vmul.f32 %v122, %v123
    %v125 = vsub.f32 1.0, %v124
    %v126 = vmul.f32 %v123, %v125
    %v127 = vadd.f32 %v123, %v126
    %vm128 = vweird.f32 %v122
    %vm129 = vweird.f32 %v123
    %vm130 = vmor %vm128, %vm129
    %v131 = vsel %vm130, %v123, %v127
    %v132 = vand.u32 2147483647, %v122
    %vm133 = vcmp.eq.f32.partialorder %v132, 8.507059e+37
    %v134 = vand.u32 %v122, 2147483648
    %v135 = vor.u32 1.1754944e-38, %v134
    %v136 = vsel %vm133, %v135, %v131
    %v137 = vld [vmem:[%s3] sm:$0xff]
    %v138 = vld [vmem:[%s3 + $0x8] sm:$0xff]
    %vm139 = vcmask 64512
    %v141 = vsel %vm139, %v119, 0
    %143 = vmatpush.msra.mxu0 0.0
    %144 = vmatpush.msra.mxu0 0.0
    %145 = vmatpush.msra.mxu0 0.0
    %146 = vmatpush.msra.mxu0 0.0
    %147 = vmatpush.msra.mxu0 0.0
    %148 = vmatpush.msra.mxu0 0.0
    %149 = vmatpush.msra.mxu0 0.0
    %150 = vmatpush.msra.mxu0 0.0
    %151 = vmatpush.msra.mxu0 0.0
    %152 = vmatpush.msra.mxu0 0.0
    %153 = vmatpush.msra.mxu0 0.0
    %154 = vmatpush.msra.mxu0 0.0
    %155 = vmatpush.msra.mxu0 0.0
    %156 = vmatpush.msra.mxu0 0.0
    %157 = vmatpush.msra.mxu0 0.0
    %158 = vmatpush.msra.mxu0 %v137
    %159 = vmatmul.f32.gmra.mxu0 %v141
    %v160 = vpop.f32.mrf.mxu0
    %v161 = vadd.f32 0.0, %v160
    %162 = vdwg.mxu0
    %163 = vmatpush.msra.mxu0 0.0
    %164 = vmatpush.msra.mxu0 0.0
    %165 = vmatpush.msra.mxu0 0.0
    %166 = vmatpush.msra.mxu0 0.0
    %167 = vmatpush.msra.mxu0 0.0
    %168 = vmatpush.msra.mxu0 0.0
    %169 = vmatpush.msra.mxu0 0.0
    %170 = vmatpush.msra.mxu0 0.0
    %171 = vmatpush.msra.mxu0 0.0
    %172 = vmatpush.msra.mxu0 0.0
    %173 = vmatpush.msra.mxu0 0.0
    %174 = vmatpush.msra.mxu0 0.0
    %175 = vmatpush.msra.mxu0 0.0
    %176 = vmatpush.msra.mxu0 0.0
    %177 = vmatpush.msra.mxu0 0.0
    %178 = vmatpush.msra.mxu0 %v138
    %179 = vmatmul.f32.gmra.mxu0 %v141
    %v180 = vpop.f32.mrf.mxu0
    %v181 = vadd.f32 0.0, %v180
    %182 = vdwg.mxu0
    %184 = vst [vmem:[#allocation1] ss:$4 sm:$0xff] %v31
    %v185 = vld.sshfl [vmem:[#allocation1] sm:$0xff pattern:$0x73625140]
    %v186 = vld.sshfl [vmem:[#allocation1 + $0x8] sm:$0xff pattern:$0x73625140]
    %v189 = vmul.f32 %v161, %v185
    %v190 = vmul.f32 %v181, %v186
    %v191 = vld [vmem:[%s4] sm:$0xff]
    %v192 = vld [vmem:[%s4 + $0x8] sm:$0xff]
    %v193 = vld [vmem:[%s4 + $0x10] sm:$0xff]
    %v194 = vld [vmem:[%s4 + $0x18] sm:$0xff]
    %v195 = vld [vmem:[%s4 + $0x20] sm:$0xff]
    %v196 = vld [vmem:[%s4 + $0x28] sm:$0xff]
    %v197 = vld [vmem:[%s4 + $0x30] sm:$0xff]
    %v198 = vld [vmem:[%s4 + $0x38] sm:$0xff]
    %v199 = vld [vmem:[%s4 + $0x40] sm:$0xff]
    %v200 = vld [vmem:[%s4 + $0x48] sm:$0xff]
    %v201 = vld [vmem:[%s4 + $0x50] sm:$0xff]
    %v202 = vld [vmem:[%s4 + $0x58] sm:$0xff]
    %v203 = vld [vmem:[%s4 + $0x60] sm:$0xff]
    %v204 = vld [vmem:[%s4 + $0x68] sm:$0xff]
    %v205 = vld [vmem:[%s4 + $0x70] sm:$0xff]
    %v206 = vld [vmem:[%s4 + $0x78] sm:$0xff]
    %v207 = vld [vmem:[%s4 + $0x80] sm:$0xff]
    %v208 = vld [vmem:[%s4 + $0x88] sm:$0xff]
    %v209 = vld [vmem:[%s4 + $0x90] sm:$0xff]
    %v210 = vld [vmem:[%s4 + $0x98] sm:$0xff]
    %v211 = vld [vmem:[%s4 + $0xa0] sm:$0xff]
    %v212 = vld [vmem:[%s4 + $0xa8] sm:$0xff]
    %v213 = vld [vmem:[%s4 + $0xb0] sm:$0xff]
    %v214 = vld [vmem:[%s4 + $0xb8] sm:$0xff]
    %v215 = vld [vmem:[%s4 + $0xc0] sm:$0xff]
    %v216 = vld [vmem:[%s4 + $0xc8] sm:$0xff]
    %v217 = vld [vmem:[%s4 + $0xd0] sm:$0xff]
    %v218 = vld [vmem:[%s4 + $0xd8] sm:$0xff]
    %v219 = vld [vmem:[%s4 + $0xe0] sm:$0xff]
    %v220 = vld [vmem:[%s4 + $0xe8] sm:$0xff]
    %v221 = vld [vmem:[%s4 + $0xf0] sm:$0xff]
    %v222 = vld [vmem:[%s4 + $0xf8] sm:$0xff]
    %223 = vmatpush.msra.mxu0 %v206
    %224 = vmatpush.msra.mxu0 %v205
    %225 = vmatpush.msra.mxu0 %v204
    %226 = vmatpush.msra.mxu0 %v203
    %227 = vmatpush.msra.mxu0 %v202
    %228 = vmatpush.msra.mxu0 %v201
    %229 = vmatpush.msra.mxu0 %v200
    %230 = vmatpush.msra.mxu0 %v199
    %231 = vmatpush.msra.mxu0 %v198
    %232 = vmatpush.msra.mxu0 %v197
    %233 = vmatpush.msra.mxu0 %v196
    %234 = vmatpush.msra.mxu0 %v195
    %235 = vmatpush.msra.mxu0 %v194
    %236 = vmatpush.msra.mxu0 %v193
    %237 = vmatpush.msra.mxu0 %v192
    %238 = vmatpush.msra.mxu0 %v191
    %239 = vmatmul.f32.gmra.mxu0 %v189
    %v240 = vpop.f32.mrf.mxu0
    %v241 = vadd.f32 0.0, %v240
    %242 = vdwg.mxu0
    %243 = vmatpush.msra.mxu0 %v222
    %244 = vmatpush.msra.mxu0 %v221
    %245 = vmatpush.msra.mxu0 %v220
    %246 = vmatpush.msra.mxu0 %v219
    %247 = vmatpush.msra.mxu0 %v218
    %248 = vmatpush.msra.mxu0 %v217
    %249 = vmatpush.msra.mxu0 %v216
    %250 = vmatpush.msra.mxu0 %v215
    %251 = vmatpush.msra.mxu0 %v214
    %252 = vmatpush.msra.mxu0 %v213
    %253 = vmatpush.msra.mxu0 %v212
    %254 = vmatpush.msra.mxu0 %v211
    %255 = vmatpush.msra.mxu0 %v210
    %256 = vmatpush.msra.mxu0 %v209
    %257 = vmatpush.msra.mxu0 %v208
    %258 = vmatpush.msra.mxu0 %v207
    %259 = vmatmul.f32.gmra.mxu0 %v190
    %v260 = vpop.f32.mrf.mxu0
    %v261 = vadd.f32 %v241, %v260
    %262 = vdwg.mxu0
    %v263 = vmul.f32 %v261, %v136
    %v264 = vld [vmem:[%s5] sm:$0xff]
    %v265 = vld [vmem:[%s5 + $0x8] sm:$0xff]
    %v266 = vld [vmem:[%s5 + $0x10] sm:$0xff]
    %v267 = vld [vmem:[%s5 + $0x18] sm:$0xff]
    %v268 = vld [vmem:[%s6] sm:$0x1]
    %v270 = vperm.slane %v268, 0
    %vm272 = vcmask 261120
    %v274 = vsel %vm272, %v263, 0
    %276 = vmatpush.msra.mxu0 0.0
    %277 = vmatpush.msra.mxu0 0.0
    %278 = vmatpush.msra.mxu0 0.0
    %279 = vmatpush.msra.mxu0 0.0
    %280 = vmatpush.msra.mxu0 0.0
    %281 = vmatpush.msra.mxu0 0.0
    %282 = vmatpush.msra.mxu0 0.0
    %283 = vmatpush.msra.mxu0 0.0
    %284 = vmatpush.msra.mxu0 0.0
    %285 = vmatpush.msra.mxu0 0.0
    %286 = vmatpush.msra.mxu0 0.0
    %287 = vmatpush.msra.mxu0 0.0
    %288 = vmatpush.msra.mxu0 %v267
    %289 = vmatpush.msra.mxu0 %v266
    %290 = vmatpush.msra.mxu0 %v265
    %291 = vmatpush.msra.mxu0 %v264
    %292 = vmatmul.f32.gmra.mxu0 %v274
    %v293 = vpop.f32.mrf.mxu0
    %v294 = vadd.f32 %v270, %v293
    %295 = vdwg.mxu0
    %vm296 = vcmask 25600
    %297 = vst.msk [vmem:[#allocation3] sm:$0x3] %vm296, %v294
    %vm298 = vcmask 254976
    %299 = vst.msk [vmem:[#allocation5] sm:$0x3] %vm298, %v263
    // Predicated region
    $region30: #{tpu_custom_call.1} parent=1 // pred_check
      _
    $region31: #{tpu_custom_call.1} parent=1 // pred_check_branch
      %301 = sbr.rel (0) target = $region33
    $region32: #{tpu_custom_call.1} parent=1 // pred_region
      %303 = vsyncadd [#allocation4], 0
      %s305 = sshll.u32 [#allocation3], 4
      %s306 = int_to_ptr.vmem [resolvable:$true] %s305
      %s307 = sshll.u32 %s7, 4
      %s308 = int_to_ptr.hbm [resolvable:$true] %s307
      %310 = dma.vmem_to_hbm [thread:$0]  %s306, 32, %s308, [#allocation4]
    $region33: #{tpu_custom_call.1} parent=1 // pred_fallthru
      _
    // Predicated region
    $region34: #{tpu_custom_call.1} parent=1 // pred_check
      _
    $region35: #{tpu_custom_call.1} parent=1 // pred_check_branch
      %312 = sbr.rel (0) target = $region37
    $region36: #{tpu_custom_call.1} parent=1 // pred_region
      %314 = vsyncadd [#allocation6], 0
      %s316 = sshll.u32 [#allocation5], 4
      %s317 = int_to_ptr.vmem [resolvable:$true] %s316
      %s318 = sshll.u32 %s8, 4
      %s319 = int_to_ptr.hbm [resolvable:$true] %s318
      %321 = dma.vmem_to_hbm [thread:$0]  %s317, 32, %s319, [#allocation6]
    $region37: #{tpu_custom_call.1} parent=1 // pred_fallthru
      _
    // Predicated region
    $region38: #{tpu_custom_call.1} parent=1 // pred_check
      _
    $region39: #{tpu_custom_call.1} parent=1 // pred_check_branch
      %323 = sbr.rel (0) target = $region41
    $region40: #{tpu_custom_call.1} parent=1 // pred_region
      %325 = dma.done [#allocation4], 32
    $region41: #{tpu_custom_call.1} parent=1 // pred_fallthru
      _
    // Predicated region
    $region42: #{tpu_custom_call.1} parent=1 // pred_check
      _
    $region43: #{tpu_custom_call.1} parent=1 // pred_check_branch
      %327 = sbr.rel (0) target = $region45
    $region44: #{tpu_custom_call.1} parent=1 // pred_region
      %329 = dma.done [#allocation6], 32
    $region45: #{tpu_custom_call.1} parent=1 // pred_fallthru
      _
    %330 = vsyncpa [#allocation4], 1
    %331 = vsyncpa [#allocation6], 1

</llo_original>
